<compile_context>
chip_gen: v7x
topology: tpu7x:2x2x1
jax: 0.10.0
libtpu: 0.0.40
codegen_flags: <defaults>
</compile_context>

<pallas_src>
import jax
import jax.numpy as jnp
from jax.experimental import pallas as pl
from jax.experimental.pallas import tpu as pltpu


def _band_weight(w_hwio, W):
    """Fold the kx taps (and the W axis) of a 3x3 'same' conv into
    block-Toeplitz matrices, one per ky tap.

    Returns m of shape (3, W*Cin, W*Cout) such that, for a row-padded input
    xp of shape (H+2, W*Cin) (rows 0 and H+1 zero, lanes laid out as
    w*Cin + cin):

        out[h, w*Cout + co] = sum_ky (xp[ky:ky+H, :] @ m[ky])[h, w*Cout + co]
                            = conv3x3_same(x, w_hwio)[h, w, co]
    """
    kh, kw, cin, cout = w_hwio.shape
    mats = []
    for ky in range(kh):
        t = jnp.zeros((W, cin, W, cout), w_hwio.dtype)
        for kx in range(kw):
            # e[u, w] = 1 iff u == w + kx - 1: input column u feeds output
            # column w through tap kx; out-of-range columns == the zero pad.
            e = jnp.eye(W, W, k=1 - kx, dtype=w_hwio.dtype)
            t = t + jnp.einsum("uw,co->ucwo", e, w_hwio[ky, kx])
        mats.append(t.reshape(W * cin, W * cout))
    return jnp.stack(mats, axis=0)


def _unet_fused_kernel(x_ref, m1_ref, b1_ref, m2_ref, b2_ref, o_ref,
                       xpad_ref, hpad_ref):
    # x_ref   : (H, W*C0)        one image, lanes = (w, cin)
    # m1_ref  : (3, W*C0, W*C1)  conv1 block-Toeplitz weights (one per ky)
    # b1_ref  : (1, W*C1)        conv1 bias tiled along W
    # m2_ref  : (3, W*C1, W*C2)  conv2 block-Toeplitz weights
    # b2_ref  : (1, W*C2)        conv2 bias tiled along W
    # o_ref   : (H, W*C2)        fused output for this image (lane-dense)
    # xpad_ref: (H+2, W*C0)      VMEM scratch, row-padded input
    # hpad_ref: (H+2, W*C1)      VMEM scratch, row-padded ReLU(conv1)
    H = x_ref.shape[0]

    # ---- conv1 + ReLU ------------------------------------------------------
    xpad_ref[...] = jnp.zeros_like(xpad_ref)           # zero border rows
    xpad_ref[1:H + 1, :] = x_ref[...].astype(xpad_ref.dtype)
    acc1 = jnp.zeros((H, m1_ref.shape[2]), jnp.float32)
    for ky in range(3):                                 # 3 MXU matmuls, K=W*C0
        acc1 = acc1 + jnp.dot(xpad_ref[ky:ky + H, :], m1_ref[ky],
                              preferred_element_type=jnp.float32)
    h1 = jnp.maximum(acc1 + b1_ref[...], 0.0)           # stays on-chip (VPU)

    # ---- conv2 ---------------------------------------------------------------
    hpad_ref[...] = jnp.zeros_like(hpad_ref)
    hpad_ref[1:H + 1, :] = h1
    acc2 = jnp.zeros((H, m2_ref.shape[2]), jnp.float32)
    for ky in range(3):                                 # 3 MXU matmuls, K=W*C1
        acc2 = acc2 + jnp.dot(hpad_ref[ky:ky + H, :], m2_ref[ky],
                              preferred_element_type=jnp.float32)
    o_ref[...] = (acc2 + b2_ref[...]).astype(o_ref.dtype)


def unet_conv_relu_conv(x_nhwc, w1, b1, w2, b2):
    """Fused conv3x3 -> ReLU -> conv3x3 ('same', stride 1). NHWC in/out."""
    N, H, W, C0 = x_nhwc.shape
    C1 = w1.shape[3]
    C2 = w2.shape[3]

    # Trace-time weight preprocessing (tiny constants, folded by XLA): fold
    # kx / W / Cout into the matmul weights; tile biases to the (w, c) layout.
    m1 = _band_weight(w1, W)                            # (3, W*C0, W*C1)
    m2 = _band_weight(w2, W)                            # (3, W*C1, W*C2)
    b1f = jnp.tile(b1, W).reshape(1, W * C1)
    b2f = jnp.tile(b2, W).reshape(1, W * C2)

    x2 = x_nhwc.reshape(N, H, W * C0)                   # lanes = (w, cin)

    out2 = pl.pallas_call(
        _unet_fused_kernel,
        out_shape=jax.ShapeDtypeStruct((N, H, W * C2), x_nhwc.dtype),
        grid=(N,),                                      # one image per grid step
        in_specs=[
            pl.BlockSpec((None, H, W * C0), lambda n: (n, 0, 0)),
            # Same block every step -> stays resident in VMEM (no re-DMA).
            pl.BlockSpec((3, W * C0, W * C1), lambda n: (0, 0, 0)),
            pl.BlockSpec((1, W * C1), lambda n: (0, 0)),
            pl.BlockSpec((3, W * C1, W * C2), lambda n: (0, 0, 0)),
            pl.BlockSpec((1, W * C2), lambda n: (0, 0)),
        ],
        out_specs=pl.BlockSpec((None, H, W * C2), lambda n: (n, 0, 0)),
        scratch_shapes=[
            pltpu.VMEM((H + 2, W * C0), jnp.float32),   # row-padded input
            pltpu.VMEM((H + 2, W * C1), jnp.float32),   # row-padded ReLU(conv1)
        ],
        compiler_params=pltpu.CompilerParams(
            dimension_semantics=("parallel",)),         # batch across TCs (v7x)
    )(x2, m1, b1f, m2, b2f)

    return out2.reshape(N, H, W, C2)


def init_params(key, num_classes):
    """Deterministic synthetic parameters matching UNet.__init__ shapes."""
    k1, k2, k3, k4 = jax.random.split(key, 4)
    return dict(
        w1=jax.random.normal(k1, (3, 3, 3, 16), jnp.float32) * 0.1,            # HWIO
        b1=jax.random.normal(k2, (16,), jnp.float32) * 0.1,
        w2=jax.random.normal(k3, (3, 3, 16, num_classes), jnp.float32) * 0.1,  # HWIO
        b2=jax.random.normal(k4, (num_classes,), jnp.float32) * 0.1,
    )


@jax.jit
def unet_forward(x_nchw, params):
    # x_nchw: (N, 3, H, W) -> output (N, num_classes, H, W), like PyTorch.
    x = jnp.transpose(x_nchw, (0, 2, 3, 1))                      # NCHW -> NHWC
    out = unet_conv_relu_conv(x, params["w1"], params["b1"],
                              params["w2"], params["b2"])
    return jnp.transpose(out, (0, 3, 1, 2))                      # NHWC -> NCHW


def ref_forward(x_nchw, params):
    # Pure-JAX reference (XLA convolutions) for correctness checking.
    x = jnp.transpose(x_nchw, (0, 2, 3, 1))
    dn = ("NHWC", "HWIO", "NHWC")
    h = jax.lax.conv_general_dilated(x, params["w1"], (1, 1), "SAME",
                                     dimension_numbers=dn) + params["b1"]
    h = jnp.maximum(h, 0.0)
    o = jax.lax.conv_general_dilated(h, params["w2"], (1, 1), "SAME",
                                     dimension_numbers=dn) + params["b2"]
    return jnp.transpose(o, (0, 3, 1, 2))


if __name__ == "__main__":
    num_classes = 4
    key = jax.random.PRNGKey(0)
    kx, kp = jax.random.split(key)

    # PyTorch-convention input: batch=2, channels=3 (conv1 expects 3), 16x16.
    x = jax.random.normal(kx, (2, 3, 16, 16), jnp.float32)
    params = init_params(kp, num_classes)

    out = jax.block_until_ready(unet_forward(x, params))
    ref = jax.block_until_ready(ref_forward(x, params))

    assert out.shape == (2, num_classes, 16, 16), out.shape
    assert jnp.allclose(out, ref, atol=1e-4, rtol=1e-4), \
        float(jnp.max(jnp.abs(out - ref)))
    print("KERNEL_OK")
</pallas_src>

<mosaic_0001>
module attributes {stable_mosaic.version = 11 : i64} {
  func.func @_unet_fused_kernel(%arg0: i32, %arg1: memref<1x16x48xf32, #tpu.memory_space<vmem>>, %arg2: memref<3x48x256xf32, #tpu.memory_space<vmem>>, %arg3: memref<1x256xf32, #tpu.memory_space<vmem>>, %arg4: memref<3x256x64xf32, #tpu.memory_space<vmem>>, %arg5: memref<1x64xf32, #tpu.memory_space<vmem>>, %arg6: memref<1x16x64xf32, #tpu.memory_space<vmem>>, %arg7: memref<18x48xf32, #tpu.memory_space<vmem>>, %arg8: memref<18x256xf32, #tpu.memory_space<vmem>>) attributes {dimension_semantics = [#tpu.dimension_semantics<parallel>], iteration_bounds = array<i64: 2>, scalar_prefetch = 0 : i64, scratch_operands = 2 : i64, tpu.core_type = #tpu.core_type<tc>, window_params = [{transform_indices = @transform_0, window_bounds = array<i64: 1, 16, 48>}, {pipeline_mode = #tpu.pipeline_mode<synchronous>, transform_indices = @transform_1, window_bounds = array<i64: 3, 48, 256>}, {pipeline_mode = #tpu.pipeline_mode<synchronous>, transform_indices = @transform_2, window_bounds = array<i64: 1, 256>}, {pipeline_mode = #tpu.pipeline_mode<synchronous>, transform_indices = @transform_3, window_bounds = array<i64: 3, 256, 64>}, {pipeline_mode = #tpu.pipeline_mode<synchronous>, transform_indices = @transform_4, window_bounds = array<i64: 1, 64>}, {transform_indices = @transform_5, window_bounds = array<i64: 1, 16, 64>}]} {
    %cst = arith.constant 0.000000e+00 : f32
    %0 = vector.broadcast %cst : f32 to vector<18x48xf32>
    %c0 = arith.constant 0 : index
    %c0_0 = arith.constant 0 : index
    %1 = vector.load %arg7[%c0, %c0_0] : memref<18x48xf32, #tpu.memory_space<vmem>>, vector<18x48xf32>
    tpu.vector_store %arg7[%c0, %c0_0], %0 {strides = array<i32>} : memref<18x48xf32, #tpu.memory_space<vmem>>, vector<18x48xf32>,
    %c0_1 = arith.constant 0 : index
    %c0_2 = arith.constant 0 : index
    %c0_3 = arith.constant 0 : index
    %2 = vector.load %arg1[%c0_1, %c0_2, %c0_3] : memref<1x16x48xf32, #tpu.memory_space<vmem>>, vector<1x16x48xf32>
    %3 = vector.shape_cast %2 : vector<1x16x48xf32> to vector<16x48xf32>
    %c1 = arith.constant 1 : index
    %c0_4 = arith.constant 0 : index
    %4 = vector.load %arg7[%c1, %c0_4] : memref<18x48xf32, #tpu.memory_space<vmem>>, vector<16x48xf32>
    tpu.vector_store %arg7[%c1, %c0_4], %3 {strides = array<i32>} : memref<18x48xf32, #tpu.memory_space<vmem>>, vector<16x48xf32>,
    %cst_5 = arith.constant 0.000000e+00 : f32
    %5 = vector.broadcast %cst_5 : f32 to vector<16x256xf32>
    %c0_6 = arith.constant 0 : index
    %c0_7 = arith.constant 0 : index
    %6 = vector.load %arg7[%c0_6, %c0_7] : memref<18x48xf32, #tpu.memory_space<vmem>>, vector<16x48xf32>
    %c0_8 = arith.constant 0 : index
    %c0_9 = arith.constant 0 : index
    %c0_10 = arith.constant 0 : index
    %7 = vector.load %arg2[%c0_8, %c0_9, %c0_10] : memref<3x48x256xf32, #tpu.memory_space<vmem>>, vector<1x48x256xf32>
    %8 = vector.shape_cast %7 : vector<1x48x256xf32> to vector<48x256xf32>
    %cst_11 = arith.constant dense<0.000000e+00> : vector<16x256xf32>
    %9 = tpu.matmul %6, %8, %cst_11 {dimension_numbers = #tpu.dot_dimension_numbers<[1], [0], [0], [1], [0, 0, 1, 1], [], []>} : vector<16x48xf32>, vector<48x256xf32>, vector<16x256xf32> -> vector<16x256xf32>
    %10 = arith.addf %5, %9 : vector<16x256xf32>
    %c1_12 = arith.constant 1 : index
    %c0_13 = arith.constant 0 : index
    %11 = vector.load %arg7[%c1_12, %c0_13] : memref<18x48xf32, #tpu.memory_space<vmem>>, vector<16x48xf32>
    %c1_14 = arith.constant 1 : index
    %c0_15 = arith.constant 0 : index
    %c0_16 = arith.constant 0 : index
    %12 = vector.load %arg2[%c1_14, %c0_15, %c0_16] : memref<3x48x256xf32, #tpu.memory_space<vmem>>, vector<1x48x256xf32>
    %13 = vector.shape_cast %12 : vector<1x48x256xf32> to vector<48x256xf32>
    %cst_17 = arith.constant dense<0.000000e+00> : vector<16x256xf32>
    %14 = tpu.matmul %11, %13, %cst_17 {dimension_numbers = #tpu.dot_dimension_numbers<[1], [0], [0], [1], [0, 0, 1, 1], [], []>} : vector<16x48xf32>, vector<48x256xf32>, vector<16x256xf32> -> vector<16x256xf32>
    %15 = arith.addf %10, %14 : vector<16x256xf32>
    %c2 = arith.constant 2 : index
    %c0_18 = arith.constant 0 : index
    %16 = vector.load %arg7[%c2, %c0_18] : memref<18x48xf32, #tpu.memory_space<vmem>>, vector<16x48xf32>
    %c2_19 = arith.constant 2 : index
    %c0_20 = arith.constant 0 : index
    %c0_21 = arith.constant 0 : index
    %17 = vector.load %arg2[%c2_19, %c0_20, %c0_21] : memref<3x48x256xf32, #tpu.memory_space<vmem>>, vector<1x48x256xf32>
    %18 = vector.shape_cast %17 : vector<1x48x256xf32> to vector<48x256xf32>
    %cst_22 = arith.constant dense<0.000000e+00> : vector<16x256xf32>
    %19 = tpu.matmul %16, %18, %cst_22 {dimension_numbers = #tpu.dot_dimension_numbers<[1], [0], [0], [1], [0, 0, 1, 1], [], []>} : vector<16x48xf32>, vector<48x256xf32>, vector<16x256xf32> -> vector<16x256xf32>
    %20 = arith.addf %15, %19 : vector<16x256xf32>
    %c0_23 = arith.constant 0 : index
    %c0_24 = arith.constant 0 : index
    %21 = vector.load %arg3[%c0_23, %c0_24] : memref<1x256xf32, #tpu.memory_space<vmem>>, vector<1x256xf32>
    %22 = vector.broadcast %21 : vector<1x256xf32> to vector<16x256xf32>
    %23 = arith.addf %20, %22 : vector<16x256xf32>
    %cst_25 = arith.constant 0.000000e+00 : f32
    %24 = vector.broadcast %cst_25 : f32 to vector<16x256xf32>
    %25 = arith.maximumf %23, %24 : vector<16x256xf32>
    %cst_26 = arith.constant 0.000000e+00 : f32
    %26 = vector.broadcast %cst_26 : f32 to vector<18x256xf32>
    %c0_27 = arith.constant 0 : index
    %c0_28 = arith.constant 0 : index
    %27 = vector.load %arg8[%c0_27, %c0_28] : memref<18x256xf32, #tpu.memory_space<vmem>>, vector<18x256xf32>
    tpu.vector_store %arg8[%c0_27, %c0_28], %26 {strides = array<i32>} : memref<18x256xf32, #tpu.memory_space<vmem>>, vector<18x256xf32>,
    %c1_29 = arith.constant 1 : index
    %c0_30 = arith.constant 0 : index
    %28 = vector.load %arg8[%c1_29, %c0_30] : memref<18x256xf32, #tpu.memory_space<vmem>>, vector<16x256xf32>
    tpu.vector_store %arg8[%c1_29, %c0_30], %25 {strides = array<i32>} : memref<18x256xf32, #tpu.memory_space<vmem>>, vector<16x256xf32>,
    %cst_31 = arith.constant 0.000000e+00 : f32
    %29 = vector.broadcast %cst_31 : f32 to vector<16x64xf32>
    %c0_32 = arith.constant 0 : index
    %c0_33 = arith.constant 0 : index
    %30 = vector.load %arg8[%c0_32, %c0_33] : memref<18x256xf32, #tpu.memory_space<vmem>>, vector<16x256xf32>
    %c0_34 = arith.constant 0 : index
    %c0_35 = arith.constant 0 : index
    %c0_36 = arith.constant 0 : index
    %31 = vector.load %arg4[%c0_34, %c0_35, %c0_36] : memref<3x256x64xf32, #tpu.memory_space<vmem>>, vector<1x256x64xf32>
    %32 = vector.shape_cast %31 : vector<1x256x64xf32> to vector<256x64xf32>
    %cst_37 = arith.constant dense<0.000000e+00> : vector<16x64xf32>
    %33 = tpu.matmul %30, %32, %cst_37 {dimension_numbers = #tpu.dot_dimension_numbers<[1], [0], [0], [1], [0, 0, 1, 1], [], []>} : vector<16x256xf32>, vector<256x64xf32>, vector<16x64xf32> -> vector<16x64xf32>
    %34 = arith.addf %29, %33 : vector<16x64xf32>
    %c1_38 = arith.constant 1 : index
    %c0_39 = arith.constant 0 : index
    %35 = vector.load %arg8[%c1_38, %c0_39] : memref<18x256xf32, #tpu.memory_space<vmem>>, vector<16x256xf32>
    %c1_40 = arith.constant 1 : index
    %c0_41 = arith.constant 0 : index
    %c0_42 = arith.constant 0 : index
    %36 = vector.load %arg4[%c1_40, %c0_41, %c0_42] : memref<3x256x64xf32, #tpu.memory_space<vmem>>, vector<1x256x64xf32>
    %37 = vector.shape_cast %36 : vector<1x256x64xf32> to vector<256x64xf32>
    %cst_43 = arith.constant dense<0.000000e+00> : vector<16x64xf32>
    %38 = tpu.matmul %35, %37, %cst_43 {dimension_numbers = #tpu.dot_dimension_numbers<[1], [0], [0], [1], [0, 0, 1, 1], [], []>} : vector<16x256xf32>, vector<256x64xf32>, vector<16x64xf32> -> vector<16x64xf32>
    %39 = arith.addf %34, %38 : vector<16x64xf32>
    %c2_44 = arith.constant 2 : index
    %c0_45 = arith.constant 0 : index
    %40 = vector.load %arg8[%c2_44, %c0_45] : memref<18x256xf32, #tpu.memory_space<vmem>>, vector<16x256xf32>
    %c2_46 = arith.constant 2 : index
    %c0_47 = arith.constant 0 : index
    %c0_48 = arith.constant 0 : index
    %41 = vector.load %arg4[%c2_46, %c0_47, %c0_48] : memref<3x256x64xf32, #tpu.memory_space<vmem>>, vector<1x256x64xf32>
    %42 = vector.shape_cast %41 : vector<1x256x64xf32> to vector<256x64xf32>
    %cst_49 = arith.constant dense<0.000000e+00> : vector<16x64xf32>
    %43 = tpu.matmul %40, %42, %cst_49 {dimension_numbers = #tpu.dot_dimension_numbers<[1], [0], [0], [1], [0, 0, 1, 1], [], []>} : vector<16x256xf32>, vector<256x64xf32>, vector<16x64xf32> -> vector<16x64xf32>
    %44 = arith.addf %39, %43 : vector<16x64xf32>
    %c0_50 = arith.constant 0 : index
    %c0_51 = arith.constant 0 : index
    %45 = vector.load %arg5[%c0_50, %c0_51] : memref<1x64xf32, #tpu.memory_space<vmem>>, vector<1x64xf32>
    %46 = vector.broadcast %45 : vector<1x64xf32> to vector<16x64xf32>
    %47 = arith.addf %44, %46 : vector<16x64xf32>
    %c0_52 = arith.constant 0 : index
    %c0_53 = arith.constant 0 : index
    %c0_54 = arith.constant 0 : index
    %48 = vector.load %arg6[%c0_52, %c0_53, %c0_54] : memref<1x16x64xf32, #tpu.memory_space<vmem>>, vector<1x16x64xf32>
    %49 = vector.shape_cast %48 : vector<1x16x64xf32> to vector<16x64xf32>
    %50 = vector.shape_cast %47 : vector<16x64xf32> to vector<1x16x64xf32>
    tpu.vector_store %arg6[%c0_52, %c0_53, %c0_54], %50 {strides = array<i32>} : memref<1x16x64xf32, #tpu.memory_space<vmem>>, vector<1x16x64xf32>,
    return
  }
  func.func @transform_0(%arg0: i32) -> (i32, i32, i32) {
    %c0_i32 = arith.constant 0 : i32
    %c0_i32_0 = arith.constant 0 : i32
    %c0_i32_1 = arith.constant 0 : i32
    return %arg0, %c0_i32, %c0_i32_0 : i32, i32, i32
  }
  func.func @transform_1(%arg0: i32) -> (i32, i32, i32) {
    %c0_i32 = arith.constant 0 : i32
    %c0_i32_0 = arith.constant 0 : i32
    %c0_i32_1 = arith.constant 0 : i32
    %c0_i32_2 = arith.constant 0 : i32
    return %c0_i32, %c0_i32_0, %c0_i32_1 : i32, i32, i32
  }
  func.func @transform_2(%arg0: i32) -> (i32, i32) {
    %c0_i32 = arith.constant 0 : i32
    %c0_i32_0 = arith.constant 0 : i32
    %c0_i32_1 = arith.constant 0 : i32
    return %c0_i32, %c0_i32_0 : i32, i32
  }
  func.func @transform_3(%arg0: i32) -> (i32, i32, i32) {
    %c0_i32 = arith.constant 0 : i32
    %c0_i32_0 = arith.constant 0 : i32
    %c0_i32_1 = arith.constant 0 : i32
    %c0_i32_2 = arith.constant 0 : i32
    return %c0_i32, %c0_i32_0, %c0_i32_1 : i32, i32, i32
  }
  func.func @transform_4(%arg0: i32) -> (i32, i32) {
    %c0_i32 = arith.constant 0 : i32
    %c0_i32_0 = arith.constant 0 : i32
    %c0_i32_1 = arith.constant 0 : i32
    return %c0_i32, %c0_i32_0 : i32, i32
  }
  func.func @transform_5(%arg0: i32) -> (i32, i32, i32) {
    %c0_i32 = arith.constant 0 : i32
    %c0_i32_0 = arith.constant 0 : i32
    %c0_i32_1 = arith.constant 0 : i32
    return %arg0, %c0_i32, %c0_i32_0 : i32, i32, i32
  }
}

</mosaic_0001>

<llo_original>
// kernel: tile.13
$region0: #{tile.13}
  #allocation0 [shape = 's32[1]{0}', space=sflag, size = 0x4, scoped, tag = 'scoped memory for tile.13']
  %s0 = inlined_call_operand.vmem [shape: f32[16], index: 0, kind: input, shape index: {}]
  %s1 = inlined_call_operand.vmem [shape: f32[16,16], index: 1, kind: output, shape index: {}]
  // Predicated region
  $region2: #{tile.13} parent=0 // pred_check
    _
  $region3: #{tile.13} parent=0 // pred_check_branch
    %3 = sbr.rel (0) target = $region5
  $region4: #{tile.13} parent=0 // pred_region
    _
  $region5: #{tile.13} parent=0 // pred_fallthru
    _
  %v4 = vld [vmem:[%s0] ss:$0 sm:$0xff]
  %5 = vst [vmem:[%s1] sm:$0xff] %v4
  %s6 = scalar_lea.vmem %s1, 8
  %7 = vst [vmem:[%s6] sm:$0xff] %v4

// kernel: tile.14
$region0: #{tile.14}
  %s0 = inlined_call_operand.vmem [shape: f32[16,16], index: 0, kind: input, shape index: {}]
  %s1 = inlined_call_operand.vmem [shape: f32[1,256], index: 1, kind: output, shape index: {}]
  $region1: #{tile.14} parent=0
    #allocation0 [shape = 'u8[8192]{0}', space=vmem, size = 0x2000, scoped, tag = 'scoped mem for output reshape']
    %s2 = smov 3
    %v3 = vld [vmem:[%s0] ss:$8 sm:%s2]
    %vm4 = vcmask 130048
    %5 = vst.msk [vmem:[#allocation0] ss:$8 sm:$0x3] %vm4, %v3
    %s6 = scalar_lea.vmem %s0, 7
    %s7 = smov 3
    %v8 = vld [vmem:[%s6] ss:$8 sm:%s7]
    %9 = vrot.lane.b32.xlu0 %v8, 112
    %v10 = vpop.permute.xlu0 %9
    %vm11 = vcmask 1048448
    %12 = vst.msk [vmem:[#allocation0] ss:$8 sm:$0x3] %vm11, %v10
    %s13 = scalar_lea.vmem %s0, 6
    %s14 = smov 3
    %v15 = vld [vmem:[%s13] ss:$8 sm:%s14]
    %16 = vrot.lane.b32.xlu0 %v15, 96
    %v17 = vpop.permute.xlu0 %16
    %vm18 = vcmask 917248
    %19 = vst.msk [vmem:[#allocation0] ss:$8 sm:$0x3] %vm18, %v17
    %s20 = scalar_lea.vmem %s0, 5
    %s21 = smov 3
    %v22 = vld [vmem:[%s20] ss:$8 sm:%s21]
    %23 = vrot.lane.b32.xlu0 %v22, 80
    %v24 = vpop.permute.xlu0 %23
    %vm25 = vcmask 786048
    %26 = vst.msk [vmem:[#allocation0] ss:$8 sm:$0x3] %vm25, %v24
    %s27 = scalar_lea.vmem %s0, 4
    %s28 = smov 3
    %v29 = vld [vmem:[%s27] ss:$8 sm:%s28]
    %30 = vrot.lane.b32.xlu0 %v29, 64
    %v31 = vpop.permute.xlu0 %30
    %vm32 = vcmask 654848
    %33 = vst.msk [vmem:[#allocation0] ss:$8 sm:$0x3] %vm32, %v31
    %s34 = scalar_lea.vmem %s0, 3
    %s35 = smov 3
    %v36 = vld [vmem:[%s34] ss:$8 sm:%s35]
    %37 = vrot.lane.b32.xlu0 %v36, 48
    %v38 = vpop.permute.xlu0 %37
    %vm39 = vcmask 523648
    %40 = vst.msk [vmem:[#allocation0] ss:$8 sm:$0x3] %vm39, %v38
    %s41 = scalar_lea.vmem %s0, 2
    %s42 = smov 3
    %v43 = vld [vmem:[%s41] ss:$8 sm:%s42]
    %44 = vrot.lane.b32.xlu0 %v43, 32
    %v45 = vpop.permute.xlu0 %44
    %vm46 = vcmask 392448
    %47 = vst.msk [vmem:[#allocation0] ss:$8 sm:$0x3] %vm46, %v45
    %s48 = scalar_lea.vmem %s0, 1
    %s49 = smov 3
    %v50 = vld [vmem:[%s48] ss:$8 sm:%s49]
    %51 = vrot.lane.b32.xlu0 %v50, 16
    %v52 = vpop.permute.xlu0 %51
    %vm53 = vcmask 261248
    %54 = vst.msk [vmem:[#allocation0] ss:$8 sm:$0x3] %vm53, %v52
    %s56 = sshllo.u32 0, 1
    %v58 = vld [vmem:[#allocation0] sm:%s56]
    %s59 = sshllo.u32 0, 1
    %60 = vst [vmem:[%s1] sm:%s59] %v58
    %s61 = scalar_lea.vmem [#allocation0], 8
    %v62 = vld [vmem:[%s61] sm:%s56]
    %s63 = sshllo.u32 0, 1
    %s64 = scalar_lea.vmem %s1, 1
    %65 = vst [vmem:[%s64] sm:%s63] %v62

// kernel: tile.18
$region0: #{tile.18}
  #allocation0 [shape = 's32[1]{0}', space=sflag, size = 0x4, scoped, tag = 'scoped memory for tile.18']
  %s0 = inlined_call_operand.vmem [shape: f32[4], index: 0, kind: input, shape index: {}]
  %s1 = inlined_call_operand.vmem [shape: f32[16,4], index: 1, kind: output, shape index: {}]
  // Predicated region
  $region2: #{tile.18} parent=0 // pred_check
    _
  $region3: #{tile.18} parent=0 // pred_check_branch
    %3 = sbr.rel (0) target = $region5
  $region4: #{tile.18} parent=0 // pred_region
    _
  $region5: #{tile.18} parent=0 // pred_fallthru
    _
  %v4 = vld [vmem:[%s0] ss:$0 sm:$0xff]
  %5 = vst [vmem:[%s1] sm:$0xff] %v4
  %s6 = scalar_lea.vmem %s1, 8
  %7 = vst [vmem:[%s6] sm:$0xff] %v4

// kernel: tile.19
$region0: #{tile.19}
  %s0 = inlined_call_operand.vmem [shape: f32[16,4], index: 0, kind: input, shape index: {}]
  %s1 = inlined_call_operand.vmem [shape: f32[1,64], index: 1, kind: output, shape index: {}]
  $region1: #{tile.19} parent=0
    #allocation0 [shape = 'u8[4096]{0}', space=vmem, size = 0x1000, scoped, tag = 'scoped mem for output reshape']
    %v2 = vld [vmem:[%s0] sm:$0x1]
    %vm3 = vcmask 31744
    %4 = vst.msk [vmem:[#allocation0] sm:$0x1] %vm3, %v2
    %s5 = scalar_lea.vmem %s0, 15
    %v6 = vld [vmem:[%s5] sm:$0x1]
    %7 = vrot.lane.b32.xlu0 %v6, 60
    %v8 = vpop.permute.xlu0 %7
    %vm9 = vcmask 523744
    %10 = vst.msk [vmem:[#allocation0] sm:$0x1] %vm9, %v8
    %s11 = scalar_lea.vmem %s0, 14
    %v12 = vld [vmem:[%s11] sm:$0x1]
    %13 = vrot.lane.b32.xlu0 %v12, 56
    %v14 = vpop.permute.xlu0 %13
    %vm15 = vcmask 490944
    %16 = vst.msk [vmem:[#allocation0] sm:$0x1] %vm15, %v14
    %s17 = scalar_lea.vmem %s0, 13
    %v18 = vld [vmem:[%s17] sm:$0x1]
    %19 = vrot.lane.b32.xlu0 %v18, 52
    %v20 = vpop.permute.xlu0 %19
    %vm21 = vcmask 458144
    %22 = vst.msk [vmem:[#allocation0] sm:$0x1] %vm21, %v20
    %s23 = scalar_lea.vmem %s0, 12
    %v24 = vld [vmem:[%s23] sm:$0x1]
    %25 = vrot.lane.b32.xlu0 %v24, 48
    %v26 = vpop.permute.xlu0 %25
    %vm27 = vcmask 425344
    %28 = vst.msk [vmem:[#allocation0] sm:$0x1] %vm27, %v26
    %s29 = scalar_lea.vmem %s0, 11
    %v30 = vld [vmem:[%s29] sm:$0x1]
    %31 = vrot.lane.b32.xlu0 %v30, 44
    %v32 = vpop.permute.xlu0 %31
    %vm33 = vcmask 392544
    %34 = vst.msk [vmem:[#allocation0] sm:$0x1] %vm33, %v32
    %s35 = scalar_lea.vmem %s0, 10
    %v36 = vld [vmem:[%s35] sm:$0x1]
    %37 = vrot.lane.b32.xlu0 %v36, 40
    %v38 = vpop.permute.xlu0 %37
    %vm39 = vcmask 359744
    %40 = vst.msk [vmem:[#allocation0] sm:$0x1] %vm39, %v38
    %s41 = scalar_lea.vmem %s0, 9
    %v42 = vld [vmem:[%s41] sm:$0x1]
    %43 = vrot.lane.b32.xlu0 %v42, 36
    %v44 = vpop.permute.xlu0 %43
    %vm45 = vcmask 326944
    %46 = vst.msk [vmem:[#allocation0] sm:$0x1] %vm45, %v44
    %s47 = scalar_lea.vmem %s0, 8
    %v48 = vld [vmem:[%s47] sm:$0x1]
    %49 = vrot.lane.b32.xlu0 %v48, 32
    %v50 = vpop.permute.xlu0 %49
    %vm51 = vcmask 294144
    %52 = vst.msk [vmem:[#allocation0] sm:$0x1] %vm51, %v50
    %s53 = scalar_lea.vmem %s0, 7
    %v54 = vld [vmem:[%s53] sm:$0x1]
    %55 = vrot.lane.b32.xlu0 %v54, 28
    %v56 = vpop.permute.xlu0 %55
    %vm57 = vcmask 261344
    %58 = vst.msk [vmem:[#allocation0] sm:$0x1] %vm57, %v56
    %s59 = scalar_lea.vmem %s0, 6
    %v60 = vld [vmem:[%s59] sm:$0x1]
    %61 = vrot.lane.b32.xlu0 %v60, 24
    %v62 = vpop.permute.xlu0 %61
    %vm63 = vcmask 228544
    %64 = vst.msk [vmem:[#allocation0] sm:$0x1] %vm63, %v62
    %s65 = scalar_lea.vmem %s0, 5
    %v66 = vld [vmem:[%s65] sm:$0x1]
    %67 = vrot.lane.b32.xlu0 %v66, 20
    %v68 = vpop.permute.xlu0 %67
    %vm69 = vcmask 195744
    %70 = vst.msk [vmem:[#allocation0] sm:$0x1] %vm69, %v68
    %s71 = scalar_lea.vmem %s0, 4
    %v72 = vld [vmem:[%s71] sm:$0x1]
    %73 = vrot.lane.b32.xlu0 %v72, 16
    %v74 = vpop.permute.xlu0 %73
    %vm75 = vcmask 162944
    %76 = vst.msk [vmem:[#allocation0] sm:$0x1] %vm75, %v74
    %s77 = scalar_lea.vmem %s0, 3
    %v78 = vld [vmem:[%s77] sm:$0x1]
    %79 = vrot.lane.b32.xlu0 %v78, 12
    %v80 = vpop.permute.xlu0 %79
    %vm81 = vcmask 130144
    %82 = vst.msk [vmem:[#allocation0] sm:$0x1] %vm81, %v80
    %s83 = scalar_lea.vmem %s0, 2
    %v84 = vld [vmem:[%s83] sm:$0x1]
    %85 = vrot.lane.b32.xlu0 %v84, 8
    %v86 = vpop.permute.xlu0 %85
    %vm87 = vcmask 97344
    %88 = vst.msk [vmem:[#allocation0] sm:$0x1] %vm87, %v86
    %s89 = scalar_lea.vmem %s0, 1
    %v90 = vld [vmem:[%s89] sm:$0x1]
    %91 = vrot.lane.b32.xlu0 %v90, 4
    %v92 = vpop.permute.xlu0 %91
    %vm93 = vcmask 64544
    %94 = vst.msk [vmem:[#allocation0] sm:$0x1] %vm93, %v92
    %s96 = sshllo.u32 0, 1
    %v98 = vld [vmem:[#allocation0] sm:%s96]
    %s99 = sshllo.u32 0, 1
    %100 = vst [vmem:[%s1] sm:%s99] %v98

// kernel: unet_forward.1
$region0: #{unet_forward.1}
  #allocation0 [shape = 'u32[]', space=smem, size = 0x4, offset = 0x4, fixed_abs, tag = 'smem constant byte address 0x4 - core index']
  #allocation1 [shape = 'u32[144,128]{1,0:T(1,128)}', space=vmem, size = 0x12000, scoped, tag = 'internal scratch']
  #allocation2 [shape = 'f32[18,48]{1,0:T(8,128)}', space=vmem, size = 0x3000, scoped, tag = 'scratch operand']
  #allocation3 [shape = 'f32[18,256]{1,0:T(8,128)}', space=vmem, size = 0x6000, scoped, tag = 'scratch operand']
  %s0 = inlined_call_operand.vmem [shape: f32[2,16,48], index: 0, kind: input, shape index: {}]
  %s1 = inlined_call_operand.vmem [shape: f32[3,48,256], index: 1, kind: input, shape index: {}]
  %s2 = inlined_call_operand.vmem [shape: f32[1,256], index: 2, kind: input, shape index: {}]
  %s3 = inlined_call_operand.vmem [shape: f32[3,256,64], index: 3, kind: input, shape index: {}]
  %s4 = inlined_call_operand.vmem [shape: f32[1,64], index: 4, kind: input, shape index: {}]
  %s5 = inlined_call_operand.vmem [shape: f32[2,16,64], index: 5, kind: output, shape index: {}]
  %s6 = sld [smem:[#allocation0]]
  $region53: #{unet_forward.1} parent=0
    _
  %s8 = ssub.s32 1, %s6
  %s9 = scalar_select 0, %s8, %s6
  loop: start=0, step=1, limit=4
  $region2: #{unet_forward.1} parent=0 // loop_pre_header
    _
  $region3: #{unet_forward.1} parent=0 // loop_header
    %s11 = sphi 0, %s15
    %p12 = scmp.ge.s32.totalorder %s11, 4
    %s21 = sphi 0, %s23
    %s24 = sphi 0, %s21
    %s25 = sphi 0, %s24
    %s41 = sphi 0, %s25
    %s45 = sphi 0, %s45
    %s47 = sphi 0, %s45
    %s48 = sphi 0, %s47
    %s62 = sphi 0, %s48
    %s66 = sphi 0, %s66
    %s68 = sphi 0, %s66
    %s69 = sphi 0, %s68
    %s83 = sphi 0, %s69
    %s87 = sphi 0, %s87
    %s89 = sphi 0, %s87
    %s90 = sphi 0, %s89
    %s104 = sphi 0, %s90
    %s108 = sphi 0, %s108
    %s110 = sphi 0, %s108
    %s111 = sphi 0, %s110
    %s125 = sphi 0, %s111
    %s131 = sphi 0, %s133
    %s134 = sphi 0, %s131
    %s135 = sphi 0, %s134
    %s151 = sphi 0, %s135
  $region4: #{unet_forward.1} parent=0 // loop_header_branch
    %14 = sbr.rel (%p12) target = $region8
  $region5: #{unet_forward.1} parent=0 // loop_body
    %s16 = ssub.s32 %s11, 1
    %s17 = ssub.s32 %s11, 2
    %s18 = sadd.s32 %s11, 1
    %s19 = ssub.s32 %s11, %s18
    %p20 = scmp.eq.s32.totalorder %s19, 0
    %s22 = sadd.s32 %s21, 1
    %s23 = scalar_select %p20, %s21, %s22
    %p26 = pneg %p20
    %p27 = scmp.eq.s32.totalorder %s11, 1
    %p28 = por %p26, %p27
    %p29 = scmp.ne.s32.totalorder %s21, %s24
    %p30 = scmp.eq.s32.totalorder %s11, 0
    %p31 = por %p29, %p30
    %p32 = scmp.ne.s32.totalorder %s21, %s24
    %p33 = scmp.eq.s32.totalorder %s16, 1
    %p34 = por %p32, %p33
    %p35 = scmp.ne.s32.totalorder %s24, %s25
    %p36 = scmp.eq.s32.totalorder %s16, 0
    %p37 = por %p35, %p36
    %p38 = scmp.ne.s32.totalorder %s24, %s25
    %p39 = scmp.eq.s32.totalorder %s17, 1
    %p40 = por %p38, %p39
    %p42 = scmp.ne.s32.totalorder %s25, %s41
    %p43 = scmp.eq.s32.totalorder %s17, 0
    %p44 = por %p42, %p43
    %s46 = sadd.s32 %s45, 1
    %p49 = scmp.eq.s32.totalorder %s11, 1
    %p50 = scmp.ne.s32.totalorder %s45, %s47
    %p51 = scmp.eq.s32.totalorder %s11, 0
    %p52 = por %p50, %p51
    %p53 = scmp.ne.s32.totalorder %s45, %s47
    %p54 = scmp.eq.s32.totalorder %s16, 1
    %p55 = por %p53, %p54
    %p56 = scmp.ne.s32.totalorder %s47, %s48
    %p57 = scmp.eq.s32.totalorder %s16, 0
    %p58 = por %p56, %p57
    %p59 = scmp.ne.s32.totalorder %s47, %s48
    %p60 = scmp.eq.s32.totalorder %s17, 1
    %p61 = por %p59, %p60
    %p63 = scmp.ne.s32.totalorder %s48, %s62
    %p64 = scmp.eq.s32.totalorder %s17, 0
    %p65 = por %p63, %p64
    %s67 = sadd.s32 %s66, 1
    %p70 = scmp.eq.s32.totalorder %s11, 1
    %p71 = scmp.ne.s32.totalorder %s66, %s68
    %p72 = scmp.eq.s32.totalorder %s11, 0
    %p73 = por %p71, %p72
    %p74 = scmp.ne.s32.totalorder %s66, %s68
    %p75 = scmp.eq.s32.totalorder %s16, 1
    %p76 = por %p74, %p75
    %p77 = scmp.ne.s32.totalorder %s68, %s69
    %p78 = scmp.eq.s32.totalorder %s16, 0
    %p79 = por %p77, %p78
    %p80 = scmp.ne.s32.totalorder %s68, %s69
    %p81 = scmp.eq.s32.totalorder %s17, 1
    %p82 = por %p80, %p81
    %p84 = scmp.ne.s32.totalorder %s69, %s83
    %p85 = scmp.eq.s32.totalorder %s17, 0
    %p86 = por %p84, %p85
    %s88 = sadd.s32 %s87, 1
    %p91 = scmp.eq.s32.totalorder %s11, 1
    %p92 = scmp.ne.s32.totalorder %s87, %s89
    %p93 = scmp.eq.s32.totalorder %s11, 0
    %p94 = por %p92, %p93
    %p95 = scmp.ne.s32.totalorder %s87, %s89
    %p96 = scmp.eq.s32.totalorder %s16, 1
    %p97 = por %p95, %p96
    %p98 = scmp.ne.s32.totalorder %s89, %s90
    %p99 = scmp.eq.s32.totalorder %s16, 0
    %p100 = por %p98, %p99
    %p101 = scmp.ne.s32.totalorder %s89, %s90
    %p102 = scmp.eq.s32.totalorder %s17, 1
    %p103 = por %p101, %p102
    %p105 = scmp.ne.s32.totalorder %s90, %s104
    %p106 = scmp.eq.s32.totalorder %s17, 0
    %p107 = por %p105, %p106
    %s109 = sadd.s32 %s108, 1
    %p112 = scmp.eq.s32.totalorder %s11, 1
    %p113 = scmp.ne.s32.totalorder %s108, %s110
    %p114 = scmp.eq.s32.totalorder %s11, 0
    %p115 = por %p113, %p114
    %p116 = scmp.ne.s32.totalorder %s108, %s110
    %p117 = scmp.eq.s32.totalorder %s16, 1
    %p118 = por %p116, %p117
    %p119 = scmp.ne.s32.totalorder %s110, %s111
    %p120 = scmp.eq.s32.totalorder %s16, 0
    %p121 = por %p119, %p120
    %p122 = scmp.ne.s32.totalorder %s110, %s111
    %p123 = scmp.eq.s32.totalorder %s17, 1
    %p124 = por %p122, %p123
    %p126 = scmp.ne.s32.totalorder %s111, %s125
    %p127 = scmp.eq.s32.totalorder %s17, 0
    %p128 = por %p126, %p127
    %s129 = ssub.s32 %s11, %s18
    %p130 = scmp.eq.s32.totalorder %s129, 0
    %s132 = sadd.s32 %s131, 1
    %s133 = scalar_select %p130, %s131, %s132
    %p136 = pneg %p130
    %p137 = scmp.eq.s32.totalorder %s11, 1
    %p138 = por %p136, %p137
    %p139 = scmp.ne.s32.totalorder %s131, %s134
    %p140 = scmp.eq.s32.totalorder %s11, 0
    %p141 = por %p139, %p140
    %p142 = scmp.ne.s32.totalorder %s131, %s134
    %p143 = scmp.eq.s32.totalorder %s16, 1
    %p144 = por %p142, %p143
    %p145 = scmp.ne.s32.totalorder %s134, %s135
    %p146 = scmp.eq.s32.totalorder %s16, 0
    %p147 = por %p145, %p146
    %p148 = scmp.ne.s32.totalorder %s134, %s135
    %p149 = scmp.eq.s32.totalorder %s17, 1
    %p150 = por %p148, %p149
    %p152 = scmp.ne.s32.totalorder %s135, %s151
    %p153 = scmp.eq.s32.totalorder %s17, 0
    %p154 = por %p152, %p153
    %p155 = scmp.le.s32.totalorder 1, %s11
    %p156 = scmp.lt.s32.totalorder %s11, 3
    %p157 = pnand %p155, %p156
    %p158 = pneg %p157
    // Predicated region
    $region9: #{unet_forward.1} parent=5 // pred_check
      _
    $region10: #{unet_forward.1} parent=5 // pred_check_branch
      %160 = sbr.rel (%p157) target = $region12
    $region11: #{unet_forward.1} parent=5 // pred_region
      %s161 = ssub.s32 %s11, 1
      // Predicated region
      $region13: #{unet_forward.1} parent=11 // pred_check
        %p162 = pneg %p58
      $region14: #{unet_forward.1} parent=11 // pred_check_branch
        %164 = sbr.rel (%p162) target = $region16
      $region15: #{unet_forward.1} parent=11 // pred_region
        _
      $region16: #{unet_forward.1} parent=11 // pred_fallthru
        _
      // Predicated region
      $region17: #{unet_forward.1} parent=11 // pred_check
        %p165 = pneg %p79
      $region18: #{unet_forward.1} parent=11 // pred_check_branch
        %167 = sbr.rel (%p165) target = $region20
      $region19: #{unet_forward.1} parent=11 // pred_region
        _
      $region20: #{unet_forward.1} parent=11 // pred_fallthru
        _
      // Predicated region
      $region21: #{unet_forward.1} parent=11 // pred_check
        %p168 = pneg %p100
      $region22: #{unet_forward.1} parent=11 // pred_check_branch
        %170 = sbr.rel (%p168) target = $region24
      $region23: #{unet_forward.1} parent=11 // pred_region
        _
      $region24: #{unet_forward.1} parent=11 // pred_fallthru
        _
      // Predicated region
      $region25: #{unet_forward.1} parent=11 // pred_check
        %p171 = pneg %p121
      $region26: #{unet_forward.1} parent=11 // pred_check_branch
        %173 = sbr.rel (%p171) target = $region28
      $region27: #{unet_forward.1} parent=11 // pred_region
        _
      $region28: #{unet_forward.1} parent=11 // pred_fallthru
        _
    $region12: #{unet_forward.1} parent=5 // pred_fallthru
      _
    %p174 = scmp.lt.s32.totalorder %s11, 2
    // Predicated region
    $region29: #{unet_forward.1} parent=5 // pred_check
      %p175 = pneg %p174
    $region30: #{unet_forward.1} parent=5 // pred_check_branch
      %177 = sbr.rel (%p175) target = $region32
    $region31: #{unet_forward.1} parent=5 // pred_region
      // Predicated region
      $region33: #{unet_forward.1} parent=31 // pred_check
        %p178 = pneg %p31
      $region34: #{unet_forward.1} parent=31 // pred_check_branch
        %180 = sbr.rel (%p178) target = $region36
      $region35: #{unet_forward.1} parent=31 // pred_region
        %p181 = scmp.lt.s32.totalorder %s11, 1
        %s182 = scalar_select %p181, %s11, 1
        %s183 = smul.addr %s182, 2
        %s184 = smul.addr %s183, 8
        %s185 = scalar_lea.vmem %s0, %s184
      $region36: #{unet_forward.1} parent=31 // pred_fallthru
        _
    $region32: #{unet_forward.1} parent=5 // pred_fallthru
      _
    %p186 = scmp.le.s32.totalorder 1, %s11
    %p187 = scmp.lt.s32.totalorder %s11, 3
    %p188 = pnand %p186, %p187
    %p189 = pneg %p188
    // Predicated region
    $region37: #{unet_forward.1} parent=5 // pred_check
      _
    $region38: #{unet_forward.1} parent=5 // pred_check_branch
      %191 = sbr.rel (%p188) target = $region40
    $region39: #{unet_forward.1} parent=5 // pred_region
      %s192 = ssub.s32 %s11, 1
      %p193 = scmp.lt.s32.totalorder %s16, 1
      %s194 = scalar_select %p193, %s16, 1
      %s195 = smul.addr %s194, 2
      %s196 = smul.addr %s195, 8
      %s197 = scalar_lea.vmem %s0, %s196
      %p198 = pneg %p37
      %p199 = pneg %p34
      %p200 = pneg %p58
      %p201 = pneg %p55
      %p202 = pneg %p79
      %p203 = pneg %p76
      %p204 = pneg %p100
      %p205 = pneg %p97
      %p206 = pneg %p121
      %p207 = pneg %p118
      %p208 = pneg %p147
      %p209 = pneg %p144
      %p210 = scmp.lt.s32.totalorder %s16, 1
      %s211 = scalar_select %p210, %s16, 1
      %s212 = smul.addr %s211, 2
      %s213 = smul.addr %s212, 8
      %s214 = scalar_lea.vmem %s5, %s213
      %p215 = scmp.lt.s32.totalorder %s16, 1
      %s216 = scalar_select %p215, %s16, 1
      %s217 = smul.addr %s216, 2
      %s218 = smul.addr %s217, 8
      %s219 = scalar_lea.vmem %s0, %s218
      %p220 = scmp.lt.s32.totalorder %s16, 1
      %s221 = scalar_select %p220, %s16, 1
      %s222 = smul.addr %s221, 2
      %s223 = smul.addr %s222, 8
      %s224 = scalar_lea.vmem %s5, %s223
      %vm225 = vcmask 392192
      %226 = vst.msk [vmem:[#allocation2] sm:$0xff] %vm225, 0.0
      %227 = vst.msk [vmem:[#allocation2 + $0x8] sm:$0xff] %vm225, 0.0
      %vm228 = vcmask 386048
      %229 = vst.msk [vmem:[#allocation2 + $0x10] sm:$0x3] %vm228, 0.0
      %v230 = vld [vmem:[%s219] sm:$0xff]
      %v231 = vld [vmem:[%s219 + $0x8] sm:$0xff]
      %232 = vst.msk [vmem:[#allocation2 + $0x1] sm:$0xff] %vm225, %v230
      %233 = vst.msk [vmem:[#allocation2 + $0x9] sm:$0xff] %vm225, %v231
      %v234 = vld [vmem:[#allocation2] sm:$0xff]
      %v235 = vld [vmem:[#allocation2 + $0x8] sm:$0xff]
      %v236 = vld [vmem:[%s1] sm:$0xff]
      %v237 = vld [vmem:[%s1 + $0x8] sm:$0xff]
      %v238 = vld [vmem:[%s1 + $0x10] sm:$0xff]
      %v239 = vld [vmem:[%s1 + $0x18] sm:$0xff]
      %v240 = vld [vmem:[%s1 + $0x20] sm:$0xff]
      %v241 = vld [vmem:[%s1 + $0x28] sm:$0xff]
      %v242 = vld [vmem:[%s1 + $0x30] sm:$0xff]
      %v243 = vld [vmem:[%s1 + $0x38] sm:$0xff]
      %v244 = vld [vmem:[%s1 + $0x40] sm:$0xff]
      %v245 = vld [vmem:[%s1 + $0x48] sm:$0xff]
      %v246 = vld [vmem:[%s1 + $0x50] sm:$0xff]
      %v247 = vld [vmem:[%s1 + $0x58] sm:$0xff]
      %v248 = vld [vmem:[#allocation2 + $0x1] sm:$0xff]
      %v249 = vld [vmem:[#allocation2 + $0x9] sm:$0xff]
      %s250 = scalar_lea.vmem %s1, 96
      %v251 = vld [vmem:[%s250] sm:$0xff]
      %v252 = vld [vmem:[%s250 + $0x8] sm:$0xff]
      %v253 = vld [vmem:[%s250 + $0x10] sm:$0xff]
      %v254 = vld [vmem:[%s250 + $0x18] sm:$0xff]
      %v255 = vld [vmem:[%s250 + $0x20] sm:$0xff]
      %v256 = vld [vmem:[%s250 + $0x28] sm:$0xff]
      %v257 = vld [vmem:[%s250 + $0x30] sm:$0xff]
      %v258 = vld [vmem:[%s250 + $0x38] sm:$0xff]
      %v259 = vld [vmem:[%s250 + $0x40] sm:$0xff]
      %v260 = vld [vmem:[%s250 + $0x48] sm:$0xff]
      %v261 = vld [vmem:[%s250 + $0x50] sm:$0xff]
      %v262 = vld [vmem:[%s250 + $0x58] sm:$0xff]
      %v264 = vsel %vm225, %v248, 0
      %v267 = vsel %vm225, %v249, 0
      %269 = vmatprep.subr.mxu0 %v252
      %270 = vmatpush1.msra.mxu0 %v251
      %271 = vmatprep.subr.mxu0 %v254
      %272 = vmatpush1.msra.mxu0 %v253
      %273 = vmatprep.subr.mxu0 %v256
      %274 = vmatpush1.msra.mxu0 %v255
      %275 = vmatprep.subr.mxu0 %v258
      %276 = vmatpush1.msra.mxu0 %v257
      %277 = vmatprep.subr.mxu0 %v260
      %278 = vmatpush1.msra.mxu0 %v259
      %279 = vmatprep.subr.mxu0 %v262
      %280 = vmatpush1.msra.mxu0 %v261
      %281 = vmatprep.subr.mxu0 0.0
      %282 = vmatpush1.msra.mxu0 0.0
      %283 = vmatprep.subr.mxu0 0.0
      %284 = vmatpush1.msra.mxu0 0.0
      %285 = vmatprep.subr.mxu0 0.0
      %286 = vmatpush1.msra.mxu0 0.0
      %287 = vmatprep.subr.mxu0 0.0
      %288 = vmatpush1.msra.mxu0 0.0
      %289 = vmatprep.subr.mxu0 0.0
      %290 = vmatpush1.msra.mxu0 0.0
      %291 = vmatprep.subr.mxu0 0.0
      %292 = vmatpush1.msra.mxu0 0.0
      %293 = vmatprep.subr.mxu0 0.0
      %294 = vmatpush1.msra.mxu0 0.0
      %295 = vmatprep.subr.mxu0 0.0
      %296 = vmatpush1.msra.mxu0 0.0
      %297 = vmatprep.subr.mxu0 0.0
      %298 = vmatpush1.msra.mxu0 0.0
      %299 = vmatprep.subr.mxu0 0.0
      %300 = vmatpush1.msra.mxu0 0.0
      %301 = vmatprep.subr.mxu0 0.0
      %302 = vmatpush1.msra.mxu0 0.0
      %303 = vmatprep.subr.mxu0 0.0
      %304 = vmatpush1.msra.mxu0 0.0
      %305 = vmatprep.subr.mxu0 0.0
      %306 = vmatpush1.msra.mxu0 0.0
      %307 = vmatprep.subr.mxu0 0.0
      %308 = vmatpush1.msra.mxu0 0.0
      %309 = vmatprep.subr.mxu0 0.0
      %310 = vmatpush1.msra.mxu0 0.0
      %311 = vmatprep.subr.mxu0 0.0
      %312 = vmatpush1.msra.mxu0 0.0
      %313 = vmatprep.subr.mxu0 0.0
      %314 = vmatpush1.msra.mxu0 0.0
      %315 = vmatprep.subr.mxu0 0.0
      %316 = vmatpush1.msra.mxu0 0.0
      %317 = vmatprep.subr.mxu0 0.0
      %318 = vmatpush1.msra.mxu0 0.0
      %319 = vmatprep.subr.mxu0 0.0
      %320 = vmatpush1.msra.mxu0 0.0
      %321 = vmatprep.subr.mxu0 0.0
      %322 = vmatpush1.msra.mxu0 0.0
      %323 = vmatprep.subr.mxu0 0.0
      %324 = vmatpush1.msra.mxu0 0.0
      %325 = vmatprep.subr.mxu0 0.0
      %326 = vmatpush1.msra.mxu0 0.0
      %327 = vmatprep.subr.mxu0 0.0
      %328 = vmatpush1.msra.mxu0 0.0
      %329 = vmatprep.subr.mxu0 0.0
      %330 = vmatpush1.msra.mxu0 0.0
      %331 = vmatprep.subr.mxu0 0.0
      %332 = vmatpush1.msra.mxu0 0.0
      %333 = vmatprep.mubr.f32.mxu0 0.0
      %334 = vmatmul.mubr.f32.gmra.mrb[0].mxu0 %v264
      %v335 = vpop.f32.mrb[0].mxu0
      %v336 = vadd.f32 0.0, %v335
      %v337 = vpop.f32.mrb[0].mxu0
      %v338 = vadd.f32 0.0, %v337
      %339 = vmatprep.mubr.f32.mxu0 0.0
      %340 = vmatmul.mubr.f32.gmra.mrb[0].mxu0 %v267
      %v341 = vpop.f32.mrb[0].mxu0
      %v342 = vadd.f32 0.0, %v341
      %v343 = vpop.f32.mrb[0].mxu0
      %v344 = vadd.f32 0.0, %v343
      %345 = vdwg.mxu0
      %v347 = vsel %vm225, %v234, 0
      %v350 = vsel %vm225, %v235, 0
      %352 = vmatprep.subr.mxu0 %v237
      %353 = vmatpush1.msra.mxu0 %v236
      %354 = vmatprep.subr.mxu0 %v239
      %355 = vmatpush1.msra.mxu0 %v238
      %356 = vmatprep.subr.mxu0 %v241
      %357 = vmatpush1.msra.mxu0 %v240
      %358 = vmatprep.subr.mxu0 %v243
      %359 = vmatpush1.msra.mxu0 %v242
      %360 = vmatprep.subr.mxu0 %v245
      %361 = vmatpush1.msra.mxu0 %v244
      %362 = vmatprep.subr.mxu0 %v247
      %363 = vmatpush1.msra.mxu0 %v246
      %364 = vmatprep.subr.mxu0 0.0
      %365 = vmatpush1.msra.mxu0 0.0
      %366 = vmatprep.subr.mxu0 0.0
      %367 = vmatpush1.msra.mxu0 0.0
      %368 = vmatprep.subr.mxu0 0.0
      %369 = vmatpush1.msra.mxu0 0.0
      %370 = vmatprep.subr.mxu0 0.0
      %371 = vmatpush1.msra.mxu0 0.0
      %372 = vmatprep.subr.mxu0 0.0
      %373 = vmatpush1.msra.mxu0 0.0
      %374 = vmatprep.subr.mxu0 0.0
      %375 = vmatpush1.msra.mxu0 0.0
      %376 = vmatprep.subr.mxu0 0.0
      %377 = vmatpush1.msra.mxu0 0.0
      %378 = vmatprep.subr.mxu0 0.0
      %379 = vmatpush1.msra.mxu0 0.0
      %380 = vmatprep.subr.mxu0 0.0
      %381 = vmatpush1.msra.mxu0 0.0
      %382 = vmatprep.subr.mxu0 0.0
      %383 = vmatpush1.msra.mxu0 0.0
      %384 = vmatprep.subr.mxu0 0.0
      %385 = vmatpush1.msra.mxu0 0.0
      %386 = vmatprep.subr.mxu0 0.0
      %387 = vmatpush1.msra.mxu0 0.0
      %388 = vmatprep.subr.mxu0 0.0
      %389 = vmatpush1.msra.mxu0 0.0
      %390 = vmatprep.subr.mxu0 0.0
      %391 = vmatpush1.msra.mxu0 0.0
      %392 = vmatprep.subr.mxu0 0.0
      %393 = vmatpush1.msra.mxu0 0.0
      %394 = vmatprep.subr.mxu0 0.0
      %395 = vmatpush1.msra.mxu0 0.0
      %396 = vmatprep.subr.mxu0 0.0
      %397 = vmatpush1.msra.mxu0 0.0
      %398 = vmatprep.subr.mxu0 0.0
      %399 = vmatpush1.msra.mxu0 0.0
      %400 = vmatprep.subr.mxu0 0.0
      %401 = vmatpush1.msra.mxu0 0.0
      %402 = vmatprep.subr.mxu0 0.0
      %403 = vmatpush1.msra.mxu0 0.0
      %404 = vmatprep.subr.mxu0 0.0
      %405 = vmatpush1.msra.mxu0 0.0
      %406 = vmatprep.subr.mxu0 0.0
      %407 = vmatpush1.msra.mxu0 0.0
      %408 = vmatprep.subr.mxu0 0.0
      %409 = vmatpush1.msra.mxu0 0.0
      %410 = vmatprep.subr.mxu0 0.0
      %411 = vmatpush1.msra.mxu0 0.0
      %412 = vmatprep.subr.mxu0 0.0
      %413 = vmatpush1.msra.mxu0 0.0
      %414 = vmatprep.subr.mxu0 0.0
      %415 = vmatpush1.msra.mxu0 0.0
      %416 = vmatprep.mubr.f32.mxu0 0.0
      %417 = vmatmul.mubr.f32.gmra.mrb[0].mxu0 %v347
      %v418 = vpop.f32.mrb[0].mxu0
      %v419 = vadd.f32 %v336, %v418
      %v420 = vpop.f32.mrb[0].mxu0
      %v421 = vadd.f32 %v338, %v420
      %422 = vmatprep.mubr.f32.mxu0 0.0
      %423 = vmatmul.mubr.f32.gmra.mrb[0].mxu0 %v350
      %v424 = vpop.f32.mrb[0].mxu0
      %v425 = vadd.f32 %v342, %v424
      %v426 = vpop.f32.mrb[0].mxu0
      %v427 = vadd.f32 %v344, %v426
      %428 = vdwg.mxu0
      %v429 = vld [vmem:[#allocation2 + $0x2] sm:$0xff]
      %v430 = vld [vmem:[#allocation2 + $0xa] sm:$0xff]
      %s431 = scalar_lea.vmem %s1, 192
      %v432 = vld [vmem:[%s431] sm:$0xff]
      %v433 = vld [vmem:[%s431 + $0x8] sm:$0xff]
      %v434 = vld [vmem:[%s431 + $0x10] sm:$0xff]
      %v435 = vld [vmem:[%s431 + $0x18] sm:$0xff]
      %v436 = vld [vmem:[%s431 + $0x20] sm:$0xff]
      %v437 = vld [vmem:[%s431 + $0x28] sm:$0xff]
      %v438 = vld [vmem:[%s431 + $0x30] sm:$0xff]
      %v439 = vld [vmem:[%s431 + $0x38] sm:$0xff]
      %v440 = vld [vmem:[%s431 + $0x40] sm:$0xff]
      %v441 = vld [vmem:[%s431 + $0x48] sm:$0xff]
      %v442 = vld [vmem:[%s431 + $0x50] sm:$0xff]
      %v443 = vld [vmem:[%s431 + $0x58] sm:$0xff]
      %v445 = vsel %vm225, %v429, 0
      %v448 = vsel %vm225, %v430, 0
      %450 = vmatprep.subr.mxu0 %v433
      %451 = vmatpush1.msra.mxu0 %v432
      %452 = vmatprep.subr.mxu0 %v435
      %453 = vmatpush1.msra.mxu0 %v434
      %454 = vmatprep.subr.mxu0 %v437
      %455 = vmatpush1.msra.mxu0 %v436
      %456 = vmatprep.subr.mxu0 %v439
      %457 = vmatpush1.msra.mxu0 %v438
      %458 = vmatprep.subr.mxu0 %v441
      %459 = vmatpush1.msra.mxu0 %v440
      %460 = vmatprep.subr.mxu0 %v443
      %461 = vmatpush1.msra.mxu0 %v442
      %462 = vmatprep.subr.mxu0 0.0
      %463 = vmatpush1.msra.mxu0 0.0
      %464 = vmatprep.subr.mxu0 0.0
      %465 = vmatpush1.msra.mxu0 0.0
      %466 = vmatprep.subr.mxu0 0.0
      %467 = vmatpush1.msra.mxu0 0.0
      %468 = vmatprep.subr.mxu0 0.0
      %469 = vmatpush1.msra.mxu0 0.0
      %470 = vmatprep.subr.mxu0 0.0
      %471 = vmatpush1.msra.mxu0 0.0
      %472 = vmatprep.subr.mxu0 0.0
      %473 = vmatpush1.msra.mxu0 0.0
      %474 = vmatprep.subr.mxu0 0.0
      %475 = vmatpush1.msra.mxu0 0.0
      %476 = vmatprep.subr.mxu0 0.0
      %477 = vmatpush1.msra.mxu0 0.0
      %478 = vmatprep.subr.mxu0 0.0
      %479 = vmatpush1.msra.mxu0 0.0
      %480 = vmatprep.subr.mxu0 0.0
      %481 = vmatpush1.msra.mxu0 0.0
      %482 = vmatprep.subr.mxu0 0.0
      %483 = vmatpush1.msra.mxu0 0.0
      %484 = vmatprep.subr.mxu0 0.0
      %485 = vmatpush1.msra.mxu0 0.0
      %486 = vmatprep.subr.mxu0 0.0
      %487 = vmatpush1.msra.mxu0 0.0
      %488 = vmatprep.subr.mxu0 0.0
      %489 = vmatpush1.msra.mxu0 0.0
      %490 = vmatprep.subr.mxu0 0.0
      %491 = vmatpush1.msra.mxu0 0.0
      %492 = vmatprep.subr.mxu0 0.0
      %493 = vmatpush1.msra.mxu0 0.0
      %494 = vmatprep.subr.mxu0 0.0
      %495 = vmatpush1.msra.mxu0 0.0
      %496 = vmatprep.subr.mxu0 0.0
      %497 = vmatpush1.msra.mxu0 0.0
      %498 = vmatprep.subr.mxu0 0.0
      %499 = vmatpush1.msra.mxu0 0.0
      %500 = vmatprep.subr.mxu0 0.0
      %501 = vmatpush1.msra.mxu0 0.0
      %502 = vmatprep.subr.mxu0 0.0
      %503 = vmatpush1.msra.mxu0 0.0
      %504 = vmatprep.subr.mxu0 0.0
      %505 = vmatpush1.msra.mxu0 0.0
      %506 = vmatprep.subr.mxu0 0.0
      %507 = vmatpush1.msra.mxu0 0.0
      %508 = vmatprep.subr.mxu0 0.0
      %509 = vmatpush1.msra.mxu0 0.0
      %510 = vmatprep.subr.mxu0 0.0
      %511 = vmatpush1.msra.mxu0 0.0
      %512 = vmatprep.subr.mxu0 0.0
      %513 = vmatpush1.msra.mxu0 0.0
      %514 = vmatprep.mubr.f32.mxu0 0.0
      %515 = vmatmul.mubr.f32.gmra.mrb[0].mxu0 %v445
      %v516 = vpop.f32.mrb[0].mxu0
      %v517 = vadd.f32 0.0, %v516
      %v518 = vpop.f32.mrb[0].mxu0
      %v519 = vadd.f32 0.0, %v518
      %520 = vmatprep.mubr.f32.mxu0 0.0
      %521 = vmatmul.mubr.f32.gmra.mrb[0].mxu0 %v448
      %v522 = vpop.f32.mrb[0].mxu0
      %v523 = vadd.f32 0.0, %v522
      %v524 = vpop.f32.mrb[0].mxu0
      %v525 = vadd.f32 0.0, %v524
      %526 = vdwg.mxu0
      %v527 = vadd.f32 %v419, %v517
      %v528 = vadd.f32 %v421, %v519
      %v529 = vadd.f32 %v425, %v523
      %v530 = vadd.f32 %v427, %v525
      %v531 = vld [vmem:[%s2] sm:$0x3]
      %v533 = vlaneseq
      %v534 = vshrl.u32 %v533, 7
      %v535 = vsub.s32 0, %v534
      %v536 = vrot.slane %v531, %v535
      %v537 = vlaneseq
      %v538 = vshrl.u32 %v537, 7
      %v539 = vsub.s32 1, %v538
      %v540 = vrot.slane %v531, %v539
      %v543 = vadd.f32 %v527, %v536
      %v544 = vadd.f32 %v528, %v540
      %v545 = vadd.f32 %v529, %v536
      %v546 = vadd.f32 %v530, %v540
      %v547 = vmax.f32 %v543, 0.0
      %v548 = vmax.f32 %v544, 0.0
      %v549 = vmax.f32 %v545, 0.0
      %v550 = vmax.f32 %v546, 0.0
      %551 = vst [vmem:[#allocation3] sm:$0xff] 0.0
      %552 = vst [vmem:[#allocation3 + $0x8] sm:$0xff] 0.0
      %553 = vst [vmem:[#allocation3 + $0x10] sm:$0xff] 0.0
      %554 = vst [vmem:[#allocation3 + $0x18] sm:$0xff] 0.0
      %555 = vst [vmem:[#allocation3 + $0x20] sm:$0x3] 0.0
      %556 = vst [vmem:[#allocation3 + $0x28] sm:$0x3] 0.0
      %vm561 = vcmask 1040384
      %v562 = vrot.slane %v547, 7
      %v563 = vrot.slane %v548, 7
      %v564 = vrot.slane %v549, 7
      %v565 = vsel %vm561, %v562, %v564
      %v566 = vrot.slane %v550, 7
      %v567 = vsel %vm561, %v563, %v566
      %574 = vst [vmem:[#allocation3] sm:$0xfe] %v562
      %575 = vst [vmem:[#allocation3 + $0x8] sm:$0xfe] %v563
      %576 = vst [vmem:[#allocation3 + $0x10] sm:$0xff] %v565
      %577 = vst [vmem:[#allocation3 + $0x18] sm:$0xff] %v567
      %578 = vst [vmem:[#allocation3 + $0x20] sm:$0x1] %v564
      %579 = vst [vmem:[#allocation3 + $0x28] sm:$0x1] %v566
      %v580 = vld [vmem:[#allocation3] sm:$0xff]
      %v581 = vld [vmem:[#allocation3 + $0x8] sm:$0xff]
      %v582 = vld [vmem:[#allocation3 + $0x10] sm:$0xff]
      %v583 = vld [vmem:[#allocation3 + $0x18] sm:$0xff]
      %v584 = vld [vmem:[%s3] sm:$0xff]
      %v585 = vld [vmem:[%s3 + $0x8] sm:$0xff]
      %v586 = vld [vmem:[%s3 + $0x10] sm:$0xff]
      %v587 = vld [vmem:[%s3 + $0x18] sm:$0xff]
      %v588 = vld [vmem:[%s3 + $0x20] sm:$0xff]
      %v589 = vld [vmem:[%s3 + $0x28] sm:$0xff]
      %v590 = vld [vmem:[%s3 + $0x30] sm:$0xff]
      %v591 = vld [vmem:[%s3 + $0x38] sm:$0xff]
      %v592 = vld [vmem:[%s3 + $0x40] sm:$0xff]
      %v593 = vld [vmem:[%s3 + $0x48] sm:$0xff]
      %v594 = vld [vmem:[%s3 + $0x50] sm:$0xff]
      %v595 = vld [vmem:[%s3 + $0x58] sm:$0xff]
      %v596 = vld [vmem:[%s3 + $0x60] sm:$0xff]
      %v597 = vld [vmem:[%s3 + $0x68] sm:$0xff]
      %v598 = vld [vmem:[%s3 + $0x70] sm:$0xff]
      %v599 = vld [vmem:[%s3 + $0x78] sm:$0xff]
      %v600 = vld [vmem:[%s3 + $0x80] sm:$0xff]
      %v601 = vld [vmem:[%s3 + $0x88] sm:$0xff]
      %v602 = vld [vmem:[%s3 + $0x90] sm:$0xff]
      %v603 = vld [vmem:[%s3 + $0x98] sm:$0xff]
      %v604 = vld [vmem:[%s3 + $0xa0] sm:$0xff]
      %v605 = vld [vmem:[%s3 + $0xa8] sm:$0xff]
      %v606 = vld [vmem:[%s3 + $0xb0] sm:$0xff]
      %v607 = vld [vmem:[%s3 + $0xb8] sm:$0xff]
      %v608 = vld [vmem:[%s3 + $0xc0] sm:$0xff]
      %v609 = vld [vmem:[%s3 + $0xc8] sm:$0xff]
      %v610 = vld [vmem:[%s3 + $0xd0] sm:$0xff]
      %v611 = vld [vmem:[%s3 + $0xd8] sm:$0xff]
      %v612 = vld [vmem:[%s3 + $0xe0] sm:$0xff]
      %v613 = vld [vmem:[%s3 + $0xe8] sm:$0xff]
      %v614 = vld [vmem:[%s3 + $0xf0] sm:$0xff]
      %v615 = vld [vmem:[%s3 + $0xf8] sm:$0xff]
      %v616 = vld [vmem:[#allocation3] sm:$0xfe]
      %v617 = vld [vmem:[#allocation3 + $0x8] sm:$0xfe]
      %v618 = vld [vmem:[#allocation3 + $0x20] sm:$0x1]
      %v619 = vld [vmem:[#allocation3 + $0x28] sm:$0x1]
      %s620 = scalar_lea.vmem %s3, 256
      %v621 = vld [vmem:[%s620] sm:$0xff]
      %v622 = vld [vmem:[%s620 + $0x8] sm:$0xff]
      %v623 = vld [vmem:[%s620 + $0x10] sm:$0xff]
      %v624 = vld [vmem:[%s620 + $0x18] sm:$0xff]
      %v625 = vld [vmem:[%s620 + $0x20] sm:$0xff]
      %v626 = vld [vmem:[%s620 + $0x28] sm:$0xff]
      %v627 = vld [vmem:[%s620 + $0x30] sm:$0xff]
      %v628 = vld [vmem:[%s620 + $0x38] sm:$0xff]
      %v629 = vld [vmem:[%s620 + $0x40] sm:$0xff]
      %v630 = vld [vmem:[%s620 + $0x48] sm:$0xff]
      %v631 = vld [vmem:[%s620 + $0x50] sm:$0xff]
      %v632 = vld [vmem:[%s620 + $0x58] sm:$0xff]
      %v633 = vld [vmem:[%s620 + $0x60] sm:$0xff]
      %v634 = vld [vmem:[%s620 + $0x68] sm:$0xff]
      %v635 = vld [vmem:[%s620 + $0x70] sm:$0xff]
      %v636 = vld [vmem:[%s620 + $0x78] sm:$0xff]
      %v637 = vld [vmem:[%s620 + $0x80] sm:$0xff]
      %v638 = vld [vmem:[%s620 + $0x88] sm:$0xff]
      %v639 = vld [vmem:[%s620 + $0x90] sm:$0xff]
      %v640 = vld [vmem:[%s620 + $0x98] sm:$0xff]
      %v641 = vld [vmem:[%s620 + $0xa0] sm:$0xff]
      %v642 = vld [vmem:[%s620 + $0xa8] sm:$0xff]
      %v643 = vld [vmem:[%s620 + $0xb0] sm:$0xff]
      %v644 = vld [vmem:[%s620 + $0xb8] sm:$0xff]
      %v645 = vld [vmem:[%s620 + $0xc0] sm:$0xff]
      %v646 = vld [vmem:[%s620 + $0xc8] sm:$0xff]
      %v647 = vld [vmem:[%s620 + $0xd0] sm:$0xff]
      %v648 = vld [vmem:[%s620 + $0xd8] sm:$0xff]
      %v649 = vld [vmem:[%s620 + $0xe0] sm:$0xff]
      %v650 = vld [vmem:[%s620 + $0xe8] sm:$0xff]
      %v651 = vld [vmem:[%s620 + $0xf0] sm:$0xff]
      %v652 = vld [vmem:[%s620 + $0xf8] sm:$0xff]
      %vm659 = vcmask 1046528
      %v660 = vrot.slane %v616, 1
      %v661 = vrot.slane %v582, 1
      %v662 = vsel %vm659, %v660, %v661
      %v663 = vrot.slane %v617, 1
      %v664 = vrot.slane %v583, 1
      %v665 = vsel %vm659, %v663, %v664
      %v666 = vrot.slane %v618, 1
      %v667 = vsel %vm659, %v661, %v666
      %v668 = vrot.slane %v619, 1
      %v669 = vsel %vm659, %v664, %v668
      %674 = vmatprep.subr.mxu0 0.0
      %675 = vmatpush1.msra.mxu0 %v621
      %676 = vmatprep.subr.mxu0 0.0
      %677 = vmatpush1.msra.mxu0 %v622
      %678 = vmatprep.subr.mxu0 0.0
      %679 = vmatpush1.msra.mxu0 %v623
      %680 = vmatprep.subr.mxu0 0.0
      %681 = vmatpush1.msra.mxu0 %v624
      %682 = vmatprep.subr.mxu0 0.0
      %683 = vmatpush1.msra.mxu0 %v625
      %684 = vmatprep.subr.mxu0 0.0
      %685 = vmatpush1.msra.mxu0 %v626
      %686 = vmatprep.subr.mxu0 0.0
      %687 = vmatpush1.msra.mxu0 %v627
      %688 = vmatprep.subr.mxu0 0.0
      %689 = vmatpush1.msra.mxu0 %v628
      %690 = vmatprep.subr.mxu0 0.0
      %691 = vmatpush1.msra.mxu0 %v629
      %692 = vmatprep.subr.mxu0 0.0
      %693 = vmatpush1.msra.mxu0 %v630
      %694 = vmatprep.subr.mxu0 0.0
      %695 = vmatpush1.msra.mxu0 %v631
      %696 = vmatprep.subr.mxu0 0.0
      %697 = vmatpush1.msra.mxu0 %v632
      %698 = vmatprep.subr.mxu0 0.0
      %699 = vmatpush1.msra.mxu0 %v633
      %700 = vmatprep.subr.mxu0 0.0
      %701 = vmatpush1.msra.mxu0 %v634
      %702 = vmatprep.subr.mxu0 0.0
      %703 = vmatpush1.msra.mxu0 %v635
      %704 = vmatprep.subr.mxu0 0.0
      %705 = vmatpush1.msra.mxu0 %v636
      %706 = vmatprep.subr.mxu0 0.0
      %707 = vmatpush1.msra.mxu0 %v637
      %708 = vmatprep.subr.mxu0 0.0
      %709 = vmatpush1.msra.mxu0 %v638
      %710 = vmatprep.subr.mxu0 0.0
      %711 = vmatpush1.msra.mxu0 %v639
      %712 = vmatprep.subr.mxu0 0.0
      %713 = vmatpush1.msra.mxu0 %v640
      %714 = vmatprep.subr.mxu0 0.0
      %715 = vmatpush1.msra.mxu0 %v641
      %716 = vmatprep.subr.mxu0 0.0
      %717 = vmatpush1.msra.mxu0 %v642
      %718 = vmatprep.subr.mxu0 0.0
      %719 = vmatpush1.msra.mxu0 %v643
      %720 = vmatprep.subr.mxu0 0.0
      %721 = vmatpush1.msra.mxu0 %v644
      %722 = vmatprep.subr.mxu0 0.0
      %723 = vmatpush1.msra.mxu0 %v645
      %724 = vmatprep.subr.mxu0 0.0
      %725 = vmatpush1.msra.mxu0 %v646
      %726 = vmatprep.subr.mxu0 0.0
      %727 = vmatpush1.msra.mxu0 %v647
      %728 = vmatprep.subr.mxu0 0.0
      %729 = vmatpush1.msra.mxu0 %v648
      %730 = vmatprep.subr.mxu0 0.0
      %731 = vmatpush1.msra.mxu0 %v649
      %732 = vmatprep.subr.mxu0 0.0
      %733 = vmatpush1.msra.mxu0 %v650
      %734 = vmatprep.subr.mxu0 0.0
      %735 = vmatpush1.msra.mxu0 %v651
      %736 = vmatprep.subr.mxu0 0.0
      %737 = vmatpush1.msra.mxu0 %v652
      %738 = vmatprep.mubr.f32.mxu0 %v665
      %739 = vmatmul.mubr.f32.gmra.mrb[0].mxu0 %v662
      %v740 = vpop.f32.mrb[0].mxu0
      %v741 = vadd.f32 0.0, %v740
      %v742 = vpop.f32.mrb[0].mxu0
      %743 = vmatprep.mubr.f32.mxu0 %v669
      %744 = vmatmul.mubr.f32.gmra.mrb[0].mxu0 %v667
      %v745 = vpop.f32.mrb[0].mxu0
      %v746 = vadd.f32 0.0, %v745
      %v747 = vpop.f32.mrb[0].mxu0
      %748 = vdwg.mxu0
      %749 = vmatprep.subr.mxu0 0.0
      %750 = vmatpush1.msra.mxu0 %v584
      %751 = vmatprep.subr.mxu0 0.0
      %752 = vmatpush1.msra.mxu0 %v585
      %753 = vmatprep.subr.mxu0 0.0
      %754 = vmatpush1.msra.mxu0 %v586
      %755 = vmatprep.subr.mxu0 0.0
      %756 = vmatpush1.msra.mxu0 %v587
      %757 = vmatprep.subr.mxu0 0.0
      %758 = vmatpush1.msra.mxu0 %v588
      %759 = vmatprep.subr.mxu0 0.0
      %760 = vmatpush1.msra.mxu0 %v589
      %761 = vmatprep.subr.mxu0 0.0
      %762 = vmatpush1.msra.mxu0 %v590
      %763 = vmatprep.subr.mxu0 0.0
      %764 = vmatpush1.msra.mxu0 %v591
      %765 = vmatprep.subr.mxu0 0.0
      %766 = vmatpush1.msra.mxu0 %v592
      %767 = vmatprep.subr.mxu0 0.0
      %768 = vmatpush1.msra.mxu0 %v593
      %769 = vmatprep.subr.mxu0 0.0
      %770 = vmatpush1.msra.mxu0 %v594
      %771 = vmatprep.subr.mxu0 0.0
      %772 = vmatpush1.msra.mxu0 %v595
      %773 = vmatprep.subr.mxu0 0.0
      %774 = vmatpush1.msra.mxu0 %v596
      %775 = vmatprep.subr.mxu0 0.0
      %776 = vmatpush1.msra.mxu0 %v597
      %777 = vmatprep.subr.mxu0 0.0
      %778 = vmatpush1.msra.mxu0 %v598
      %779 = vmatprep.subr.mxu0 0.0
      %780 = vmatpush1.msra.mxu0 %v599
      %781 = vmatprep.subr.mxu0 0.0
      %782 = vmatpush1.msra.mxu0 %v600
      %783 = vmatprep.subr.mxu0 0.0
      %784 = vmatpush1.msra.mxu0 %v601
      %785 = vmatprep.subr.mxu0 0.0
      %786 = vmatpush1.msra.mxu0 %v602
      %787 = vmatprep.subr.mxu0 0.0
      %788 = vmatpush1.msra.mxu0 %v603
      %789 = vmatprep.subr.mxu0 0.0
      %790 = vmatpush1.msra.mxu0 %v604
      %791 = vmatprep.subr.mxu0 0.0
      %792 = vmatpush1.msra.mxu0 %v605
      %793 = vmatprep.subr.mxu0 0.0
      %794 = vmatpush1.msra.mxu0 %v606
      %795 = vmatprep.subr.mxu0 0.0
      %796 = vmatpush1.msra.mxu0 %v607
      %797 = vmatprep.subr.mxu0 0.0
      %798 = vmatpush1.msra.mxu0 %v608
      %799 = vmatprep.subr.mxu0 0.0
      %800 = vmatpush1.msra.mxu0 %v609
      %801 = vmatprep.subr.mxu0 0.0
      %802 = vmatpush1.msra.mxu0 %v610
      %803 = vmatprep.subr.mxu0 0.0
      %804 = vmatpush1.msra.mxu0 %v611
      %805 = vmatprep.subr.mxu0 0.0
      %806 = vmatpush1.msra.mxu0 %v612
      %807 = vmatprep.subr.mxu0 0.0
      %808 = vmatpush1.msra.mxu0 %v613
      %809 = vmatprep.subr.mxu0 0.0
      %810 = vmatpush1.msra.mxu0 %v614
      %811 = vmatprep.subr.mxu0 0.0
      %812 = vmatpush1.msra.mxu0 %v615
      %813 = vmatprep.mubr.f32.mxu0 %v581
      %814 = vmatmul.mubr.f32.gmra.mrb[0].mxu0 %v580
      %v815 = vpop.f32.mrb[0].mxu0
      %v816 = vadd.f32 %v741, %v815
      %v817 = vpop.f32.mrb[0].mxu0
      %818 = vmatprep.mubr.f32.mxu0 %v583
      %819 = vmatmul.mubr.f32.gmra.mrb[0].mxu0 %v582
      %v820 = vpop.f32.mrb[0].mxu0
      %v821 = vadd.f32 %v746, %v820
      %v822 = vpop.f32.mrb[0].mxu0
      %823 = vdwg.mxu0
      %v824 = vld [vmem:[#allocation3] sm:$0xfc]
      %v825 = vld [vmem:[#allocation3 + $0x8] sm:$0xfc]
      %v826 = vld [vmem:[#allocation3 + $0x20] sm:$0x3]
      %v827 = vld [vmem:[#allocation3 + $0x28] sm:$0x3]
      %s828 = scalar_lea.vmem %s3, 512
      %v829 = vld [vmem:[%s828] sm:$0xff]
      %v830 = vld [vmem:[%s828 + $0x8] sm:$0xff]
      %v831 = vld [vmem:[%s828 + $0x10] sm:$0xff]
      %v832 = vld [vmem:[%s828 + $0x18] sm:$0xff]
      %v833 = vld [vmem:[%s828 + $0x20] sm:$0xff]
      %v834 = vld [vmem:[%s828 + $0x28] sm:$0xff]
      %v835 = vld [vmem:[%s828 + $0x30] sm:$0xff]
      %v836 = vld [vmem:[%s828 + $0x38] sm:$0xff]
      %v837 = vld [vmem:[%s828 + $0x40] sm:$0xff]
      %v838 = vld [vmem:[%s828 + $0x48] sm:$0xff]
      %v839 = vld [vmem:[%s828 + $0x50] sm:$0xff]
      %v840 = vld [vmem:[%s828 + $0x58] sm:$0xff]
      %v841 = vld [vmem:[%s828 + $0x60] sm:$0xff]
      %v842 = vld [vmem:[%s828 + $0x68] sm:$0xff]
      %v843 = vld [vmem:[%s828 + $0x70] sm:$0xff]
      %v844 = vld [vmem:[%s828 + $0x78] sm:$0xff]
      %v845 = vld [vmem:[%s828 + $0x80] sm:$0xff]
      %v846 = vld [vmem:[%s828 + $0x88] sm:$0xff]
      %v847 = vld [vmem:[%s828 + $0x90] sm:$0xff]
      %v848 = vld [vmem:[%s828 + $0x98] sm:$0xff]
      %v849 = vld [vmem:[%s828 + $0xa0] sm:$0xff]
      %v850 = vld [vmem:[%s828 + $0xa8] sm:$0xff]
      %v851 = vld [vmem:[%s828 + $0xb0] sm:$0xff]
      %v852 = vld [vmem:[%s828 + $0xb8] sm:$0xff]
      %v853 = vld [vmem:[%s828 + $0xc0] sm:$0xff]
      %v854 = vld [vmem:[%s828 + $0xc8] sm:$0xff]
      %v855 = vld [vmem:[%s828 + $0xd0] sm:$0xff]
      %v856 = vld [vmem:[%s828 + $0xd8] sm:$0xff]
      %v857 = vld [vmem:[%s828 + $0xe0] sm:$0xff]
      %v858 = vld [vmem:[%s828 + $0xe8] sm:$0xff]
      %v859 = vld [vmem:[%s828 + $0xf0] sm:$0xff]
      %v860 = vld [vmem:[%s828 + $0xf8] sm:$0xff]
      %vm865 = vcmask 1045504
      %v866 = vrot.slane %v824, 2
      %v867 = vrot.slane %v582, 2
      %v868 = vsel %vm865, %v866, %v867
      %v869 = vrot.slane %v825, 2
      %v870 = vrot.slane %v583, 2
      %v871 = vsel %vm865, %v869, %v870
      %v872 = vrot.slane %v826, 2
      %v873 = vsel %vm865, %v867, %v872
      %v874 = vrot.slane %v827, 2
      %v875 = vsel %vm865, %v870, %v874
      %880 = vmatprep.subr.mxu0 0.0
      %881 = vmatpush1.msra.mxu0 %v829
      %882 = vmatprep.subr.mxu0 0.0
      %883 = vmatpush1.msra.mxu0 %v830
      %884 = vmatprep.subr.mxu0 0.0
      %885 = vmatpush1.msra.mxu0 %v831
      %886 = vmatprep.subr.mxu0 0.0
      %887 = vmatpush1.msra.mxu0 %v832
      %888 = vmatprep.subr.mxu0 0.0
      %889 = vmatpush1.msra.mxu0 %v833
      %890 = vmatprep.subr.mxu0 0.0
      %891 = vmatpush1.msra.mxu0 %v834
      %892 = vmatprep.subr.mxu0 0.0
      %893 = vmatpush1.msra.mxu0 %v835
      %894 = vmatprep.subr.mxu0 0.0
      %895 = vmatpush1.msra.mxu0 %v836
      %896 = vmatprep.subr.mxu0 0.0
      %897 = vmatpush1.msra.mxu0 %v837
      %898 = vmatprep.subr.mxu0 0.0
      %899 = vmatpush1.msra.mxu0 %v838
      %900 = vmatprep.subr.mxu0 0.0
      %901 = vmatpush1.msra.mxu0 %v839
      %902 = vmatprep.subr.mxu0 0.0
      %903 = vmatpush1.msra.mxu0 %v840
      %904 = vmatprep.subr.mxu0 0.0
      %905 = vmatpush1.msra.mxu0 %v841
      %906 = vmatprep.subr.mxu0 0.0
      %907 = vmatpush1.msra.mxu0 %v842
      %908 = vmatprep.subr.mxu0 0.0
      %909 = vmatpush1.msra.mxu0 %v843
      %910 = vmatprep.subr.mxu0 0.0
      %911 = vmatpush1.msra.mxu0 %v844
      %912 = vmatprep.subr.mxu0 0.0
      %913 = vmatpush1.msra.mxu0 %v845
      %914 = vmatprep.subr.mxu0 0.0
      %915 = vmatpush1.msra.mxu0 %v846
      %916 = vmatprep.subr.mxu0 0.0
      %917 = vmatpush1.msra.mxu0 %v847
      %918 = vmatprep.subr.mxu0 0.0
      %919 = vmatpush1.msra.mxu0 %v848
      %920 = vmatprep.subr.mxu0 0.0
      %921 = vmatpush1.msra.mxu0 %v849
      %922 = vmatprep.subr.mxu0 0.0
      %923 = vmatpush1.msra.mxu0 %v850
      %924 = vmatprep.subr.mxu0 0.0
      %925 = vmatpush1.msra.mxu0 %v851
      %926 = vmatprep.subr.mxu0 0.0
      %927 = vmatpush1.msra.mxu0 %v852
      %928 = vmatprep.subr.mxu0 0.0
      %929 = vmatpush1.msra.mxu0 %v853
      %930 = vmatprep.subr.mxu0 0.0
      %931 = vmatpush1.msra.mxu0 %v854
      %932 = vmatprep.subr.mxu0 0.0
      %933 = vmatpush1.msra.mxu0 %v855
      %934 = vmatprep.subr.mxu0 0.0
      %935 = vmatpush1.msra.mxu0 %v856
      %936 = vmatprep.subr.mxu0 0.0
      %937 = vmatpush1.msra.mxu0 %v857
      %938 = vmatprep.subr.mxu0 0.0
      %939 = vmatpush1.msra.mxu0 %v858
      %940 = vmatprep.subr.mxu0 0.0
      %941 = vmatpush1.msra.mxu0 %v859
      %942 = vmatprep.subr.mxu0 0.0
      %943 = vmatpush1.msra.mxu0 %v860
      %944 = vmatprep.mubr.f32.mxu0 %v871
      %945 = vmatmul.mubr.f32.gmra.mrb[0].mxu0 %v868
      %v946 = vpop.f32.mrb[0].mxu0
      %v947 = vadd.f32 0.0, %v946
      %v948 = vpop.f32.mrb[0].mxu0
      %949 = vmatprep.mubr.f32.mxu0 %v875
      %950 = vmatmul.mubr.f32.gmra.mrb[0].mxu0 %v873
      %v951 = vpop.f32.mrb[0].mxu0
      %v952 = vadd.f32 0.0, %v951
      %v953 = vpop.f32.mrb[0].mxu0
      %954 = vdwg.mxu0
      %v955 = vadd.f32 %v816, %v947
      %v956 = vadd.f32 %v821, %v952
      %v957 = vld [vmem:[%s4] sm:$0x1]
      %v959 = vlaneseq
      %v960 = vshrl.u32 %v959, 7
      %v961 = vsub.s32 0, %v960
      %v962 = vrot.slane %v957, %v961
      %v964 = vadd.f32 %v955, %v962
      %v965 = vadd.f32 %v956, %v962
      %vm966 = vcmask 523264
      %967 = vst.msk [vmem:[%s224] sm:$0xff] %vm966, %v964
      %968 = vst.msk [vmem:[%s224 + $0x8] sm:$0xff] %vm966, %v965
      %p969 = scmp.lt.s32.totalorder %s16, 1
      %s970 = scalar_select %p969, %s16, 1
      %s971 = smul.addr %s970, 2
      %s972 = smul.addr %s971, 8
      %s973 = scalar_lea.vmem %s5, %s972
      // Predicated region
      $region41: #{unet_forward.1} parent=39 // pred_check
        %p974 = pneg %p144
      $region42: #{unet_forward.1} parent=39 // pred_check_branch
        %976 = sbr.rel (%p974) target = $region44
      $region43: #{unet_forward.1} parent=39 // pred_region
        _
      $region44: #{unet_forward.1} parent=39 // pred_fallthru
        _
    $region40: #{unet_forward.1} parent=5 // pred_fallthru
      _
    %p977 = scmp.le.s32.totalorder 2, %s11
    // Predicated region
    $region45: #{unet_forward.1} parent=5 // pred_check
      %p978 = pneg %p977
    $region46: #{unet_forward.1} parent=5 // pred_check_branch
      %980 = sbr.rel (%p978) target = $region48
    $region47: #{unet_forward.1} parent=5 // pred_region
      %s981 = ssub.s32 %s11, 2
      // Predicated region
      $region49: #{unet_forward.1} parent=47 // pred_check
        %p982 = pneg %p150
      $region50: #{unet_forward.1} parent=47 // pred_check_branch
        %984 = sbr.rel (%p982) target = $region52
      $region51: #{unet_forward.1} parent=47 // pred_region
        %p985 = scmp.lt.s32.totalorder %s17, 1
        %s986 = scalar_select %p985, %s17, 1
        %s987 = smul.addr %s986, 2
        %s988 = smul.addr %s987, 8
        %s989 = scalar_lea.vmem %s5, %s988
      $region52: #{unet_forward.1} parent=47 // pred_fallthru
        _
    $region48: #{unet_forward.1} parent=5 // pred_fallthru
      _
  $region6: #{unet_forward.1} parent=0 // loop_footer
    %s15 = sadd.s32 1, %s11
  $region7: #{unet_forward.1} parent=0 // loop_footer_branch
    %10 = sbr.rel target = $region3
  $region8: #{unet_forward.1} parent=0 // loop_exit
    _

</llo_original>
